<compile_context>
chip_gen: v5e
topology: v5e:2x2
jax: 0.10.0
libtpu: 0.0.40
codegen_flags: <defaults>
</compile_context>

<pallas_src>
import jax
import jax.numpy as jnp
from jax.experimental import pallas as pl
from jax.experimental.pallas import tpu as pltpu

EPS = 1e-5
_VPU_CONV_MAX_CIN = 8  # below this, the 1x1x1 conv is a handful of FMAs/row


def _conv1x1(w, x):
    """1x1x1 conv, channels-first: (Cout, Cin) @ (Cin, S) -> (Cout, S)."""
    cin = x.shape[0]
    if cin <= _VPU_CONV_MAX_CIN:
        # Tiny channel count: do the contraction on the VPU (broadcast FMAs)
        # instead of padding a 128-lane MXU tile.
        acc = w[:, 0:1] * x[0:1, :]
        for c in range(1, cin):
            acc = acc + w[:, c:c + 1] * x[c:c + 1, :]
        return acc
    return jnp.dot(w, x, preferred_element_type=jnp.float32)


def _inorm_relu(y):
    """Per-row InstanceNorm over the spatial (lane) axis, then ReLU.

    One-pass biased variance E[y^2] - E[y]^2 (f32 accumulation, guarded >= 0).
    rsqrt goes to the EUP (free bundle slot next to the VPU work).
    """
    mu = jnp.mean(y, axis=-1, keepdims=True)
    ex2 = jnp.mean(y * y, axis=-1, keepdims=True)
    var = jnp.maximum(ex2 - mu * mu, 0.0)
    yn = (y - mu) * jax.lax.rsqrt(var + EPS)
    return jnp.maximum(yn, 0.0)


def _kernel(x_ref, wc_ref, w01_ref, o_ref):
    x0 = x_ref[...].astype(jnp.float32)       # (C, S)
    wc = wc_ref[...].astype(jnp.float32)      # (C, C)
    w01 = w01_ref[...].astype(jnp.float32)    # (2C, C) = [W0 ; W1]
    C = x0.shape[0]

    # NOTE: conv biases are omitted on purpose -- InstanceNorm (no affine)
    # subtracts the per-channel mean, so (W x + b) and (W x) normalize to the
    # exact same tensor.  The reference below keeps the biases and matches.
    x1 = _inorm_relu(_conv1x1(wc, x0))                      # self.conv
    a = jax.nn.sigmoid(_inorm_relu(_conv1x1(w01, x1)))      # atten0 | atten1 fused

    # out = x0*(x1*a0) + x1*a1  ==  x1*(x0*a0 + a1): one fewer (C,S) multiply.
    o_ref[...] = (x1 * (x0 * a[:C, :] + a[C:, :])).astype(o_ref.dtype)


def process_module_bn_pallas(x_ncdhw, params):
    """x_ncdhw: (N, C, D, H, W) float32. params: dict of weights/biases."""
    N, C, D, H, W = x_ncdhw.shape
    S = D * H * W
    # Channels-first: NCDHW -> (N, C, S) is a free (contiguous) reshape.
    x = x_ncdhw.reshape(N, C, S)

    wc = params["wc"]
    w01 = jnp.concatenate([params["w0"], params["w1"]], axis=0)  # (2C, C)

    # VMEM budget: ~8-10 live (C,S)/(2C,S) f32 buffers (x0, x1, a, temps) plus
    # double-buffered in/out blocks and the (tiny) weights.
    vmem_est = 10 * C * S * 4 + 4 * (3 * C * C) * 4
    vmem_limit = int(min(max(vmem_est, 8 << 20), 64 << 20))
    # TODO(synk): for large volumes (~8 * C*S*4B exceeding VMEM, esp. v7x's
    # 64 MiB) restructure to a spatial-tiled multi-pass (accumulate per-channel
    # sum/sumsq across tiles, then normalize/combine) with a parallel spatial
    # grid axis.

    out = pl.pallas_call(
        _kernel,
        out_shape=jax.ShapeDtypeStruct((N, C, S), x.dtype),
        grid_spec=pltpu.PrefetchScalarGridSpec(
            num_scalar_prefetch=0,
            grid=(N,),
            in_specs=[
                pl.BlockSpec((None, C, S), lambda n: (n, 0, 0)),   # x (squeezed batch)
                pl.BlockSpec((C, C), lambda n: (0, 0)),            # conv weight
                pl.BlockSpec((2 * C, C), lambda n: (0, 0)),        # [atten0; atten1]
            ],
            out_specs=pl.BlockSpec((None, C, S), lambda n: (n, 0, 0)),
        ),
        compiler_params=pltpu.CompilerParams(
            dimension_semantics=("parallel",),
            vmem_limit_bytes=vmem_limit),
    )(x, wc, w01)

    return out.reshape(N, C, D, H, W)


def _reference(x_ncdhw, params):
    # Pure-JAX reference mirroring the PyTorch module (biases included), NCDHW.
    def conv1x1(x, w, b):
        return jnp.einsum("ncdhw,oc->nodhw", x, w) + b[None, :, None, None, None]

    def inorm(y):
        mu = jnp.mean(y, axis=(2, 3, 4), keepdims=True)
        var = jnp.mean((y - mu) ** 2, axis=(2, 3, 4), keepdims=True)
        return (y - mu) * jax.lax.rsqrt(var + EPS)

    relu = lambda t: jnp.maximum(t, 0.0)
    x1 = relu(inorm(conv1x1(x_ncdhw, params["wc"], params["bc"])))
    a0 = jax.nn.sigmoid(relu(inorm(conv1x1(x1, params["w0"], params["b0"]))))
    a1 = jax.nn.sigmoid(relu(inorm(conv1x1(x1, params["w1"], params["b1"]))))
    return x_ncdhw * (x1 * a0) + (x1 * a1)


if __name__ == "__main__":
    key = jax.random.PRNGKey(0)
    # in_ch == out_ch == 4 (required by the module's own forward); S = 4*8*8 =
    # 256 keeps the lane axis a multiple of 128.
    N, C, D, H, W = 2, 4, 4, 8, 8

    k = jax.random.split(key, 8)
    x = jax.random.normal(k[0], (N, C, D, H, W), dtype=jnp.float32)
    fan_in = C  # 1x1x1 conv
    bound = 1.0 / (fan_in ** 0.5)
    params = {
        "wc": jax.random.uniform(k[1], (C, C), jnp.float32, -bound, bound),
        "bc": jax.random.uniform(k[2], (C,), jnp.float32, -bound, bound),
        "w0": jax.random.uniform(k[3], (C, C), jnp.float32, -bound, bound),
        "b0": jax.random.uniform(k[4], (C,), jnp.float32, -bound, bound),
        "w1": jax.random.uniform(k[5], (C, C), jnp.float32, -bound, bound),
        "b1": jax.random.uniform(k[6], (C,), jnp.float32, -bound, bound),
    }

    out = process_module_bn_pallas(x, params)
    out = jax.block_until_ready(out)

    ref = jax.block_until_ready(_reference(x, params))
    assert out.shape == (N, C, D, H, W)
    assert jnp.allclose(out, ref, atol=1e-4, rtol=1e-4), "mismatch vs reference"
    print("KERNEL_OK")
</pallas_src>

<mosaic_0001>
module attributes {stable_mosaic.version = 11 : i64} {
  func.func @_kernel(%arg0: i32, %arg1: memref<1x4x256xf32, #tpu.memory_space<vmem>>, %arg2: memref<4x4xf32, #tpu.memory_space<vmem>>, %arg3: memref<8x4xf32, #tpu.memory_space<vmem>>, %arg4: memref<1x4x256xf32, #tpu.memory_space<vmem>>) attributes {dimension_semantics = [#tpu.dimension_semantics<parallel>], iteration_bounds = array<i64: 2>, scalar_prefetch = 0 : i64, scratch_operands = 0 : i64, tpu.core_type = #tpu.core_type<tc>, window_params = [{transform_indices = @transform_0, window_bounds = array<i64: 1, 4, 256>}, {pipeline_mode = #tpu.pipeline_mode<synchronous>, transform_indices = @transform_1, window_bounds = array<i64: 4, 4>}, {pipeline_mode = #tpu.pipeline_mode<synchronous>, transform_indices = @transform_2, window_bounds = array<i64: 8, 4>}, {transform_indices = @transform_3, window_bounds = array<i64: 1, 4, 256>}]} {
    %c0 = arith.constant 0 : index
    %c0_0 = arith.constant 0 : index
    %c0_1 = arith.constant 0 : index
    %0 = vector.load %arg1[%c0, %c0_0, %c0_1] : memref<1x4x256xf32, #tpu.memory_space<vmem>>, vector<1x4x256xf32>
    %1 = vector.shape_cast %0 : vector<1x4x256xf32> to vector<4x256xf32>
    %c0_2 = arith.constant 0 : index
    %c0_3 = arith.constant 0 : index
    %2 = vector.load %arg2[%c0_2, %c0_3] : memref<4x4xf32, #tpu.memory_space<vmem>>, vector<4x4xf32>
    %c0_4 = arith.constant 0 : index
    %c0_5 = arith.constant 0 : index
    %3 = vector.load %arg3[%c0_4, %c0_5] : memref<8x4xf32, #tpu.memory_space<vmem>>, vector<8x4xf32>
    %4 = vector.extract_strided_slice %2 {offsets = [0, 0], sizes = [4, 1], strides = [1, 1]} : vector<4x4xf32> to vector<4x1xf32>
    %5 = vector.extract_strided_slice %1 {offsets = [0, 0], sizes = [1, 256], strides = [1, 1]} : vector<4x256xf32> to vector<1x256xf32>
    %6 = vector.broadcast %4 : vector<4x1xf32> to vector<4x256xf32>
    %7 = vector.broadcast %5 : vector<1x256xf32> to vector<4x256xf32>
    %8 = arith.mulf %6, %7 : vector<4x256xf32>
    %9 = vector.extract_strided_slice %2 {offsets = [0, 1], sizes = [4, 1], strides = [1, 1]} : vector<4x4xf32> to vector<4x1xf32>
    %10 = vector.extract_strided_slice %1 {offsets = [1, 0], sizes = [1, 256], strides = [1, 1]} : vector<4x256xf32> to vector<1x256xf32>
    %11 = vector.broadcast %9 : vector<4x1xf32> to vector<4x256xf32>
    %12 = vector.broadcast %10 : vector<1x256xf32> to vector<4x256xf32>
    %13 = arith.mulf %11, %12 : vector<4x256xf32>
    %14 = arith.addf %8, %13 : vector<4x256xf32>
    %15 = vector.extract_strided_slice %2 {offsets = [0, 2], sizes = [4, 1], strides = [1, 1]} : vector<4x4xf32> to vector<4x1xf32>
    %16 = vector.extract_strided_slice %1 {offsets = [2, 0], sizes = [1, 256], strides = [1, 1]} : vector<4x256xf32> to vector<1x256xf32>
    %17 = vector.broadcast %15 : vector<4x1xf32> to vector<4x256xf32>
    %18 = vector.broadcast %16 : vector<1x256xf32> to vector<4x256xf32>
    %19 = arith.mulf %17, %18 : vector<4x256xf32>
    %20 = arith.addf %14, %19 : vector<4x256xf32>
    %21 = vector.extract_strided_slice %2 {offsets = [0, 3], sizes = [4, 1], strides = [1, 1]} : vector<4x4xf32> to vector<4x1xf32>
    %22 = vector.extract_strided_slice %1 {offsets = [3, 0], sizes = [1, 256], strides = [1, 1]} : vector<4x256xf32> to vector<1x256xf32>
    %23 = vector.broadcast %21 : vector<4x1xf32> to vector<4x256xf32>
    %24 = vector.broadcast %22 : vector<1x256xf32> to vector<4x256xf32>
    %25 = arith.mulf %23, %24 : vector<4x256xf32>
    %26 = arith.addf %20, %25 : vector<4x256xf32>
    %cst = arith.constant dense<0.000000e+00> : vector<4xf32>
    %27 = vector.multi_reduction <add>, %26, %cst [1] : vector<4x256xf32> to vector<4xf32>
    %28 = vector.shape_cast %27 : vector<4xf32> to vector<4x1xf32>
    %cst_6 = arith.constant 2.560000e+02 : f32
    %29 = vector.broadcast %cst_6 : f32 to vector<4x1xf32>
    %30 = arith.divf %28, %29 : vector<4x1xf32>
    %31 = arith.mulf %26, %26 : vector<4x256xf32>
    %cst_7 = arith.constant dense<0.000000e+00> : vector<4xf32>
    %32 = vector.multi_reduction <add>, %31, %cst_7 [1] : vector<4x256xf32> to vector<4xf32>
    %33 = vector.shape_cast %32 : vector<4xf32> to vector<4x1xf32>
    %cst_8 = arith.constant 2.560000e+02 : f32
    %34 = vector.broadcast %cst_8 : f32 to vector<4x1xf32>
    %35 = arith.divf %33, %34 : vector<4x1xf32>
    %36 = arith.mulf %30, %30 : vector<4x1xf32>
    %37 = arith.subf %35, %36 : vector<4x1xf32>
    %cst_9 = arith.constant 0.000000e+00 : f32
    %38 = vector.broadcast %cst_9 : f32 to vector<4x1xf32>
    %39 = arith.maximumf %37, %38 : vector<4x1xf32>
    %40 = vector.broadcast %30 : vector<4x1xf32> to vector<4x256xf32>
    %41 = arith.subf %26, %40 : vector<4x256xf32>
    %cst_10 = arith.constant 9.99999974E-6 : f32
    %42 = vector.broadcast %cst_10 : f32 to vector<4x1xf32>
    %43 = arith.addf %39, %42 : vector<4x1xf32>
    %44 = math.rsqrt %43 : vector<4x1xf32>
    %45 = vector.broadcast %44 : vector<4x1xf32> to vector<4x256xf32>
    %46 = arith.mulf %41, %45 : vector<4x256xf32>
    %cst_11 = arith.constant 0.000000e+00 : f32
    %47 = vector.broadcast %cst_11 : f32 to vector<4x256xf32>
    %48 = arith.maximumf %46, %47 : vector<4x256xf32>
    %49 = vector.extract_strided_slice %3 {offsets = [0, 0], sizes = [8, 1], strides = [1, 1]} : vector<8x4xf32> to vector<8x1xf32>
    %50 = vector.extract_strided_slice %48 {offsets = [0, 0], sizes = [1, 256], strides = [1, 1]} : vector<4x256xf32> to vector<1x256xf32>
    %51 = vector.broadcast %49 : vector<8x1xf32> to vector<8x256xf32>
    %52 = vector.broadcast %50 : vector<1x256xf32> to vector<8x256xf32>
    %53 = arith.mulf %51, %52 : vector<8x256xf32>
    %54 = vector.extract_strided_slice %3 {offsets = [0, 1], sizes = [8, 1], strides = [1, 1]} : vector<8x4xf32> to vector<8x1xf32>
    %55 = vector.extract_strided_slice %48 {offsets = [1, 0], sizes = [1, 256], strides = [1, 1]} : vector<4x256xf32> to vector<1x256xf32>
    %56 = vector.broadcast %54 : vector<8x1xf32> to vector<8x256xf32>
    %57 = vector.broadcast %55 : vector<1x256xf32> to vector<8x256xf32>
    %58 = arith.mulf %56, %57 : vector<8x256xf32>
    %59 = arith.addf %53, %58 : vector<8x256xf32>
    %60 = vector.extract_strided_slice %3 {offsets = [0, 2], sizes = [8, 1], strides = [1, 1]} : vector<8x4xf32> to vector<8x1xf32>
    %61 = vector.extract_strided_slice %48 {offsets = [2, 0], sizes = [1, 256], strides = [1, 1]} : vector<4x256xf32> to vector<1x256xf32>
    %62 = vector.broadcast %60 : vector<8x1xf32> to vector<8x256xf32>
    %63 = vector.broadcast %61 : vector<1x256xf32> to vector<8x256xf32>
    %64 = arith.mulf %62, %63 : vector<8x256xf32>
    %65 = arith.addf %59, %64 : vector<8x256xf32>
    %66 = vector.extract_strided_slice %3 {offsets = [0, 3], sizes = [8, 1], strides = [1, 1]} : vector<8x4xf32> to vector<8x1xf32>
    %67 = vector.extract_strided_slice %48 {offsets = [3, 0], sizes = [1, 256], strides = [1, 1]} : vector<4x256xf32> to vector<1x256xf32>
    %68 = vector.broadcast %66 : vector<8x1xf32> to vector<8x256xf32>
    %69 = vector.broadcast %67 : vector<1x256xf32> to vector<8x256xf32>
    %70 = arith.mulf %68, %69 : vector<8x256xf32>
    %71 = arith.addf %65, %70 : vector<8x256xf32>
    %cst_12 = arith.constant dense<0.000000e+00> : vector<8xf32>
    %72 = vector.multi_reduction <add>, %71, %cst_12 [1] : vector<8x256xf32> to vector<8xf32>
    %73 = vector.shape_cast %72 : vector<8xf32> to vector<8x1xf32>
    %cst_13 = arith.constant 2.560000e+02 : f32
    %74 = vector.broadcast %cst_13 : f32 to vector<8x1xf32>
    %75 = arith.divf %73, %74 : vector<8x1xf32>
    %76 = arith.mulf %71, %71 : vector<8x256xf32>
    %cst_14 = arith.constant dense<0.000000e+00> : vector<8xf32>
    %77 = vector.multi_reduction <add>, %76, %cst_14 [1] : vector<8x256xf32> to vector<8xf32>
    %78 = vector.shape_cast %77 : vector<8xf32> to vector<8x1xf32>
    %cst_15 = arith.constant 2.560000e+02 : f32
    %79 = vector.broadcast %cst_15 : f32 to vector<8x1xf32>
    %80 = arith.divf %78, %79 : vector<8x1xf32>
    %81 = arith.mulf %75, %75 : vector<8x1xf32>
    %82 = arith.subf %80, %81 : vector<8x1xf32>
    %cst_16 = arith.constant 0.000000e+00 : f32
    %83 = vector.broadcast %cst_16 : f32 to vector<8x1xf32>
    %84 = arith.maximumf %82, %83 : vector<8x1xf32>
    %85 = vector.broadcast %75 : vector<8x1xf32> to vector<8x256xf32>
    %86 = arith.subf %71, %85 : vector<8x256xf32>
    %cst_17 = arith.constant 9.99999974E-6 : f32
    %87 = vector.broadcast %cst_17 : f32 to vector<8x1xf32>
    %88 = arith.addf %84, %87 : vector<8x1xf32>
    %89 = math.rsqrt %88 : vector<8x1xf32>
    %90 = vector.broadcast %89 : vector<8x1xf32> to vector<8x256xf32>
    %91 = arith.mulf %86, %90 : vector<8x256xf32>
    %cst_18 = arith.constant 0.000000e+00 : f32
    %92 = vector.broadcast %cst_18 : f32 to vector<8x256xf32>
    %93 = arith.maximumf %91, %92 : vector<8x256xf32>
    %94 = arith.negf %93 : vector<8x256xf32>
    %95 = math.exp %94 : vector<8x256xf32>
    %cst_19 = arith.constant 1.000000e+00 : f32
    %96 = vector.broadcast %cst_19 : f32 to vector<8x256xf32>
    %97 = arith.addf %96, %95 : vector<8x256xf32>
    %98 = arith.divf %96, %97 : vector<8x256xf32>
    %99 = vector.extract_strided_slice %98 {offsets = [0, 0], sizes = [4, 256], strides = [1, 1]} : vector<8x256xf32> to vector<4x256xf32>
    %100 = arith.mulf %1, %99 : vector<4x256xf32>
    %101 = vector.extract_strided_slice %98 {offsets = [4, 0], sizes = [4, 256], strides = [1, 1]} : vector<8x256xf32> to vector<4x256xf32>
    %102 = arith.addf %100, %101 : vector<4x256xf32>
    %103 = arith.mulf %48, %102 : vector<4x256xf32>
    %c0_20 = arith.constant 0 : index
    %c0_21 = arith.constant 0 : index
    %c0_22 = arith.constant 0 : index
    %104 = vector.load %arg4[%c0_20, %c0_21, %c0_22] : memref<1x4x256xf32, #tpu.memory_space<vmem>>, vector<1x4x256xf32>
    %105 = vector.shape_cast %104 : vector<1x4x256xf32> to vector<4x256xf32>
    %106 = vector.shape_cast %103 : vector<4x256xf32> to vector<1x4x256xf32>
    tpu.vector_store %arg4[%c0_20, %c0_21, %c0_22], %106 {strides = array<i32>} : memref<1x4x256xf32, #tpu.memory_space<vmem>>, vector<1x4x256xf32>,
    return
  }
  func.func @transform_0(%arg0: i32) -> (i32, i32, i32) {
    %c0_i32 = arith.constant 0 : i32
    %c0_i32_0 = arith.constant 0 : i32
    %c0_i32_1 = arith.constant 0 : i32
    return %arg0, %c0_i32, %c0_i32_0 : i32, i32, i32
  }
  func.func @transform_1(%arg0: i32) -> (i32, i32) {
    %c0_i32 = arith.constant 0 : i32
    %c0_i32_0 = arith.constant 0 : i32
    %c0_i32_1 = arith.constant 0 : i32
    return %c0_i32, %c0_i32_0 : i32, i32
  }
  func.func @transform_2(%arg0: i32) -> (i32, i32) {
    %c0_i32 = arith.constant 0 : i32
    %c0_i32_0 = arith.constant 0 : i32
    %c0_i32_1 = arith.constant 0 : i32
    return %c0_i32, %c0_i32_0 : i32, i32
  }
  func.func @transform_3(%arg0: i32) -> (i32, i32, i32) {
    %c0_i32 = arith.constant 0 : i32
    %c0_i32_0 = arith.constant 0 : i32
    %c0_i32_1 = arith.constant 0 : i32
    return %arg0, %c0_i32, %c0_i32_0 : i32, i32, i32
  }
}

</mosaic_0001>

<llo_original>
// kernel: tpu_custom_call.1
$region0: #{tpu_custom_call.1}
  #allocation0 [shape = 'u32[]', space=smem, size = 0x4, offset = 0x4, fixed_abs, tag = 'smem constant byte address 0x4 - core index']
  #allocation1 [shape = 'u32[72,128]{1,0:T(1,128)}', space=vmem, size = 0x9000, scoped, tag = 'internal scratch']
  %s0 = inlined_call_operand.hbm [shape: f32[2,4,256], index: 0, kind: input, shape index: {}]
  %s1 = inlined_call_operand.vmem [shape: f32[4,4], index: 1, kind: input, shape index: {}]
  %s2 = inlined_call_operand.vmem [shape: f32[8,4], index: 2, kind: input, shape index: {}]
  %s3 = inlined_call_operand.hbm [shape: f32[2,4,256], index: 3, kind: output, shape index: {}]
  %s4 = sld [smem:[#allocation0]]
  $region49: #{tpu_custom_call.1} parent=0
    _
  %s6 = ssub.s32 1, %s4
  %s7 = scalar_select 0, %s6, %s4
  $region1: #{tpu_custom_call.1} parent=0
    #allocation2 [shape = 'u8[8192]{0}', space=vmem, size = 0x2000, scoped, tag = 'input window, operand 0']
    #allocation3 [shape = 's32[2]{0}', space=sflag, size = 0x8, scoped, tag = 'scoped memory for tpu_custom_call.1']
    #allocation4 [shape = 's32[2]{0}', space=sflag, size = 0x8, scoped, tag = 'scoped memory for tpu_custom_call.1']
    #allocation5 [shape = 'u8[8192]{0}', space=vmem, size = 0x2000, scoped, tag = 'output window, operand 0']
    %8 = vsyncpa [#allocation3], 0
    %s9 = scalar_lea.sflag [#allocation3], 1
    %10 = vsyncpa %s9, 0
    %11 = vsyncpa [#allocation4], 0
    %s12 = scalar_lea.sflag [#allocation4], 1
    %13 = vsyncpa %s12, 0
    loop: start=0, step=1, limit=4
    $region2: #{tpu_custom_call.1} parent=1 // loop_pre_header
      _
    $region3: #{tpu_custom_call.1} parent=1 // loop_header
      %s15 = sphi 0, %s19
      %p16 = scmp.ge.s32.totalorder %s15, 4
      %s25 = sphi 0, %s27
      %s28 = sphi 0, %s25
      %s29 = sphi 0, %s28
      %s45 = sphi 0, %s29
      %s49 = sphi 0, %s49
      %s51 = sphi 0, %s49
      %s52 = sphi 0, %s51
      %s66 = sphi 0, %s52
      %s70 = sphi 0, %s70
      %s72 = sphi 0, %s70
      %s73 = sphi 0, %s72
      %s87 = sphi 0, %s73
      %s93 = sphi 0, %s95
      %s96 = sphi 0, %s93
      %s97 = sphi 0, %s96
      %s113 = sphi 0, %s97
    $region4: #{tpu_custom_call.1} parent=1 // loop_header_branch
      %18 = sbr.rel (%p16) target = $region8
    $region5: #{tpu_custom_call.1} parent=1 // loop_body
      %s20 = ssub.s32 %s15, 1
      %s21 = ssub.s32 %s15, 2
      %s22 = sadd.s32 %s15, 1
      %s23 = ssub.s32 %s15, %s22
      %p24 = scmp.eq.s32.totalorder %s23, 0
      %s26 = sadd.s32 %s25, 1
      %s27 = scalar_select %p24, %s25, %s26
      %p30 = pneg %p24
      %p31 = scmp.eq.s32.totalorder %s15, 1
      %p32 = por %p30, %p31
      %p33 = scmp.ne.s32.totalorder %s25, %s28
      %p34 = scmp.eq.s32.totalorder %s15, 0
      %p35 = por %p33, %p34
      %p36 = scmp.ne.s32.totalorder %s25, %s28
      %p37 = scmp.eq.s32.totalorder %s20, 1
      %p38 = por %p36, %p37
      %p39 = scmp.ne.s32.totalorder %s28, %s29
      %p40 = scmp.eq.s32.totalorder %s20, 0
      %p41 = por %p39, %p40
      %p42 = scmp.ne.s32.totalorder %s28, %s29
      %p43 = scmp.eq.s32.totalorder %s21, 1
      %p44 = por %p42, %p43
      %p46 = scmp.ne.s32.totalorder %s29, %s45
      %p47 = scmp.eq.s32.totalorder %s21, 0
      %p48 = por %p46, %p47
      %s50 = sadd.s32 %s49, 1
      %p53 = scmp.eq.s32.totalorder %s15, 1
      %p54 = scmp.ne.s32.totalorder %s49, %s51
      %p55 = scmp.eq.s32.totalorder %s15, 0
      %p56 = por %p54, %p55
      %p57 = scmp.ne.s32.totalorder %s49, %s51
      %p58 = scmp.eq.s32.totalorder %s20, 1
      %p59 = por %p57, %p58
      %p60 = scmp.ne.s32.totalorder %s51, %s52
      %p61 = scmp.eq.s32.totalorder %s20, 0
      %p62 = por %p60, %p61
      %p63 = scmp.ne.s32.totalorder %s51, %s52
      %p64 = scmp.eq.s32.totalorder %s21, 1
      %p65 = por %p63, %p64
      %p67 = scmp.ne.s32.totalorder %s52, %s66
      %p68 = scmp.eq.s32.totalorder %s21, 0
      %p69 = por %p67, %p68
      %s71 = sadd.s32 %s70, 1
      %p74 = scmp.eq.s32.totalorder %s15, 1
      %p75 = scmp.ne.s32.totalorder %s70, %s72
      %p76 = scmp.eq.s32.totalorder %s15, 0
      %p77 = por %p75, %p76
      %p78 = scmp.ne.s32.totalorder %s70, %s72
      %p79 = scmp.eq.s32.totalorder %s20, 1
      %p80 = por %p78, %p79
      %p81 = scmp.ne.s32.totalorder %s72, %s73
      %p82 = scmp.eq.s32.totalorder %s20, 0
      %p83 = por %p81, %p82
      %p84 = scmp.ne.s32.totalorder %s72, %s73
      %p85 = scmp.eq.s32.totalorder %s21, 1
      %p86 = por %p84, %p85
      %p88 = scmp.ne.s32.totalorder %s73, %s87
      %p89 = scmp.eq.s32.totalorder %s21, 0
      %p90 = por %p88, %p89
      %s91 = ssub.s32 %s15, %s22
      %p92 = scmp.eq.s32.totalorder %s91, 0
      %s94 = sadd.s32 %s93, 1
      %s95 = scalar_select %p92, %s93, %s94
      %p98 = pneg %p92
      %p99 = scmp.eq.s32.totalorder %s15, 1
      %p100 = por %p98, %p99
      %p101 = scmp.ne.s32.totalorder %s93, %s96
      %p102 = scmp.eq.s32.totalorder %s15, 0
      %p103 = por %p101, %p102
      %p104 = scmp.ne.s32.totalorder %s93, %s96
      %p105 = scmp.eq.s32.totalorder %s20, 1
      %p106 = por %p104, %p105
      %p107 = scmp.ne.s32.totalorder %s96, %s97
      %p108 = scmp.eq.s32.totalorder %s20, 0
      %p109 = por %p107, %p108
      %p110 = scmp.ne.s32.totalorder %s96, %s97
      %p111 = scmp.eq.s32.totalorder %s21, 1
      %p112 = por %p110, %p111
      %p114 = scmp.ne.s32.totalorder %s97, %s113
      %p115 = scmp.eq.s32.totalorder %s21, 0
      %p116 = por %p114, %p115
      %p117 = scmp.le.s32.totalorder 1, %s15
      %p118 = scmp.lt.s32.totalorder %s15, 3
      %p119 = pnand %p117, %p118
      %p120 = pneg %p119
      // Predicated region
      $region9: #{tpu_custom_call.1} parent=5 // pred_check
        _
      $region10: #{tpu_custom_call.1} parent=5 // pred_check_branch
        %122 = sbr.rel (%p119) target = $region12
      $region11: #{tpu_custom_call.1} parent=5 // pred_region
        %s123 = ssub.s32 %s15, 1
        // Predicated region
        $region13: #{tpu_custom_call.1} parent=11 // pred_check
          %p124 = pneg %p62
        $region14: #{tpu_custom_call.1} parent=11 // pred_check_branch
          %126 = sbr.rel (%p124) target = $region16
        $region15: #{tpu_custom_call.1} parent=11 // pred_region
          _
        $region16: #{tpu_custom_call.1} parent=11 // pred_fallthru
          _
        // Predicated region
        $region17: #{tpu_custom_call.1} parent=11 // pred_check
          %p127 = pneg %p83
        $region18: #{tpu_custom_call.1} parent=11 // pred_check_branch
          %129 = sbr.rel (%p127) target = $region20
        $region19: #{tpu_custom_call.1} parent=11 // pred_region
          _
        $region20: #{tpu_custom_call.1} parent=11 // pred_fallthru
          _
      $region12: #{tpu_custom_call.1} parent=5 // pred_fallthru
        _
      %p130 = scmp.lt.s32.totalorder %s15, 2
      // Predicated region
      $region21: #{tpu_custom_call.1} parent=5 // pred_check
        %p131 = pneg %p130
      $region22: #{tpu_custom_call.1} parent=5 // pred_check_branch
        %133 = sbr.rel (%p131) target = $region24
      $region23: #{tpu_custom_call.1} parent=5 // pred_region
        // Predicated region
        $region25: #{tpu_custom_call.1} parent=23 // pred_check
          %p134 = pneg %p35
        $region26: #{tpu_custom_call.1} parent=23 // pred_check_branch
          %136 = sbr.rel (%p134) target = $region28
        $region27: #{tpu_custom_call.1} parent=23 // pred_region
          %s137 = sand.u32 %s25, 1
          %s138 = scalar_lea.sflag [#allocation3], %s137
          %s139 = sand.u32 %s25, 1
          %s140 = smul.addr %s139, 8
          %s141 = scalar_lea.vmem [#allocation2], %s140
          %143 = vsyncadd %s138, 0
          %s144 = smul.addr %s15, 2
          %s145 = smul.addr %s144, 4
          %s146 = scalar_lea.hbm %s0, %s145
          %s148 = sshll.u32 %s146, 4
          %s149 = int_to_ptr.hbm [resolvable:$true] %s148
          %s150 = sshll.u32 %s141, 4
          %s151 = int_to_ptr.vmem [resolvable:$true] %s150
          %153 = dma.hbm_to_vmem [thread:$0]  %s149, 128, %s151, %s138
        $region28: #{tpu_custom_call.1} parent=23 // pred_fallthru
          _
      $region24: #{tpu_custom_call.1} parent=5 // pred_fallthru
        _
      %p154 = scmp.le.s32.totalorder 1, %s15
      %p155 = scmp.lt.s32.totalorder %s15, 3
      %p156 = pnand %p154, %p155
      %p157 = pneg %p156
      // Predicated region
      $region29: #{tpu_custom_call.1} parent=5 // pred_check
        _
      $region30: #{tpu_custom_call.1} parent=5 // pred_check_branch
        %159 = sbr.rel (%p156) target = $region32
      $region31: #{tpu_custom_call.1} parent=5 // pred_region
        %s160 = ssub.s32 %s15, 1
        %s161 = sand.u32 %s28, 1
        %s162 = scalar_lea.sflag [#allocation3], %s161
        %s163 = sand.u32 %s28, 1
        %s164 = smul.addr %s163, 8
        %s165 = scalar_lea.vmem [#allocation2], %s164
        // Predicated region
        $region33: #{tpu_custom_call.1} parent=31 // pred_check
          %p166 = pneg %p41
        $region34: #{tpu_custom_call.1} parent=31 // pred_check_branch
          %168 = sbr.rel (%p166) target = $region36
        $region35: #{tpu_custom_call.1} parent=31 // pred_region
          %170 = dma.done %s162, 128
        $region36: #{tpu_custom_call.1} parent=31 // pred_fallthru
          _
        %s171 = sand.u32 %s28, 1
        %s172 = scalar_lea.sflag [#allocation3], %s171
        %s173 = sand.u32 %s28, 1
        %s174 = smul.addr %s173, 8
        %s175 = scalar_lea.vmem [#allocation2], %s174
        %p176 = pneg %p41
        %p177 = pneg %p38
        %p178 = pneg %p62
        %p179 = pneg %p59
        %p180 = pneg %p83
        %p181 = pneg %p80
        %p182 = pneg %p109
        %p183 = pneg %p106
        %s184 = sand.u32 %s96, 1
        %s185 = scalar_lea.sflag [#allocation4], %s184
        %s186 = sand.u32 %s96, 1
        %s187 = smul.addr %s186, 8
        %s188 = scalar_lea.vmem [#allocation5], %s187
        %v189 = vld [vmem:[%s165] sm:$0xff]
        %v190 = vld [vmem:[%s1] sm:$0xf]
        %v191 = vld [vmem:[%s2] sm:$0xff]
        %193 = vset.pattern.permute.xlu0 0
        %194 = vperm.xlu0 %193, %v190
        %v195 = vpop.permute.xlu0 %194
        %v198 = vperm.slane %v189, 0
        %v199 = vperm.slane %v189, 4
        %v202 = vperm.slane %v198, 0
        %v203 = vperm.slane %v199, 0
        %v204 = vmul.f32 %v195, %v202
        %v205 = vmul.f32 %v195, %v203
        %206 = vset.pattern.permute.xlu0 1
        %207 = vperm.xlu0 %206, %v190
        %v208 = vpop.permute.xlu0 %207
        %v210 = vperm.slane %v189, 1
        %v211 = vperm.slane %v189, 5
        %v214 = vperm.slane %v210, 1
        %v215 = vperm.slane %v211, 1
        %v216 = vmul.f32 %v208, %v214
        %v217 = vmul.f32 %v208, %v215
        %v218 = vadd.f32 %v204, %v216
        %v219 = vadd.f32 %v205, %v217
        %220 = vset.pattern.permute.xlu0 2
        %221 = vperm.xlu0 %220, %v190
        %v222 = vpop.permute.xlu0 %221
        %v224 = vperm.slane %v189, 2
        %v225 = vperm.slane %v189, 6
        %v228 = vperm.slane %v224, 2
        %v229 = vperm.slane %v225, 2
        %v230 = vmul.f32 %v222, %v228
        %v231 = vmul.f32 %v222, %v229
        %v232 = vadd.f32 %v218, %v230
        %v233 = vadd.f32 %v219, %v231
        %234 = vset.pattern.permute.xlu0 3
        %235 = vperm.xlu0 %234, %v190
        %v236 = vpop.permute.xlu0 %235
        %v238 = vperm.slane %v189, 3
        %v239 = vperm.slane %v189, 7
        %v242 = vperm.slane %v238, 3
        %v243 = vperm.slane %v239, 3
        %v244 = vmul.f32 %v236, %v242
        %v245 = vmul.f32 %v236, %v243
        %v246 = vadd.f32 %v232, %v244
        %v247 = vadd.f32 %v233, %v245
        %vm248 = vcmask 1043456
        %v249 = vsel %vm248, %v246, 0.0
        %v250 = vsel %vm248, %v247, 0.0
        %v251 = vadd.f32 %v249, %v250
        %252 = vadd.xlane.f32.xlu0 %v251
        %v253 = vpop.xlane.xlu0 %252
        %v254 = vrcp.pop 256.0
        %v255 = vmul.f32 256.0, %v254
        %v256 = vsub.f32 1.0, %v255
        %v257 = vmul.f32 %v254, %v256
        %v258 = vadd.f32 %v254, %v257
        %vm259 = vweird.f32 %v254
        %v260 = vsel %vm259, %v254, %v258
        %v261 = vmul.f32 %v253, %v260
        %v262 = vmul.f32 %v246, %v246
        %v263 = vmul.f32 %v247, %v247
        %v264 = vsel %vm248, %v262, 0.0
        %v265 = vsel %vm248, %v263, 0.0
        %v266 = vadd.f32 %v264, %v265
        %267 = vadd.xlane.f32.xlu0 %v266
        %v268 = vpop.xlane.xlu0 %267
        %v269 = vmul.f32 %v268, %v260
        %v270 = vmul.f32 %v261, %v261
        %v271 = vsub.f32 %v269, %v270
        %v272 = vmax.f32 %v271, 0.0
        %v273 = vsub.f32 %v246, %v261
        %v274 = vsub.f32 %v247, %v261
        %v275 = vadd.f32 %v272, 1e-05
        %v276 = vrsqrt.pop %v275
        %v277 = vmul.f32 %v276, %v275
        %v278 = vmul.f32 %v277, %v276
        %v279 = vmul.f32 0.5, %v278
        %v280 = vsub.f32 1.5, %v279
        %v281 = vmul.f32 %v276, %v280
        %vm282 = vweird.f32 %v275
        %vm283 = vweird.f32 %v276
        %vm284 = vmor %vm282, %vm283
        %v285 = vsel %vm284, %v276, %v281
        %v286 = vmul.f32 %v273, %v285
        %v287 = vmul.f32 %v274, %v285
        %v288 = vmax.f32 %v286, 0.0
        %v289 = vmax.f32 %v287, 0.0
        %291 = vset.pattern.permute.xlu0 0
        %292 = vperm.xlu0 %291, %v191
        %v293 = vpop.permute.xlu0 %292
        %v295 = vperm.slane %v288, 0
        %v296 = vperm.slane %v289, 0
        %v297 = vmul.f32 %v293, %v295
        %v298 = vmul.f32 %v293, %v296
        %299 = vset.pattern.permute.xlu0 1
        %300 = vperm.xlu0 %299, %v191
        %v301 = vpop.permute.xlu0 %300
        %v303 = vperm.slane %v288, 1
        %v304 = vperm.slane %v289, 1
        %v305 = vmul.f32 %v301, %v303
        %v306 = vmul.f32 %v301, %v304
        %v307 = vadd.f32 %v297, %v305
        %v308 = vadd.f32 %v298, %v306
        %309 = vset.pattern.permute.xlu0 2
        %310 = vperm.xlu0 %309, %v191
        %v311 = vpop.permute.xlu0 %310
        %v313 = vperm.slane %v288, 2
        %v314 = vperm.slane %v289, 2
        %v315 = vmul.f32 %v311, %v313
        %v316 = vmul.f32 %v311, %v314
        %v317 = vadd.f32 %v307, %v315
        %v318 = vadd.f32 %v308, %v316
        %319 = vset.pattern.permute.xlu0 3
        %320 = vperm.xlu0 %319, %v191
        %v321 = vpop.permute.xlu0 %320
        %v323 = vperm.slane %v288, 3
        %v324 = vperm.slane %v289, 3
        %v325 = vmul.f32 %v321, %v323
        %v326 = vmul.f32 %v321, %v324
        %v327 = vadd.f32 %v317, %v325
        %v328 = vadd.f32 %v318, %v326
        %v329 = vadd.f32 %v327, %v328
        %330 = vadd.xlane.f32.xlu0 %v329
        %v331 = vpop.xlane.xlu0 %330
        %v332 = vmul.f32 %v331, %v260
        %v333 = vmul.f32 %v327, %v327
        %v334 = vmul.f32 %v328, %v328
        %v335 = vadd.f32 %v333, %v334
        %336 = vadd.xlane.f32.xlu0 %v335
        %v337 = vpop.xlane.xlu0 %336
        %v338 = vmul.f32 %v337, %v260
        %v339 = vmul.f32 %v332, %v332
        %v340 = vsub.f32 %v338, %v339
        %v341 = vmax.f32 %v340, 0.0
        %v342 = vsub.f32 %v327, %v332
        %v343 = vsub.f32 %v328, %v332
        %v344 = vadd.f32 %v341, 1e-05
        %v345 = vrsqrt.pop %v344
        %v346 = vmul.f32 %v345, %v344
        %v347 = vmul.f32 %v346, %v345
        %v348 = vmul.f32 0.5, %v347
        %v349 = vsub.f32 1.5, %v348
        %v350 = vmul.f32 %v345, %v349
        %vm351 = vweird.f32 %v344
        %vm352 = vweird.f32 %v345
        %vm353 = vmor %vm351, %vm352
        %v354 = vsel %vm353, %v345, %v350
        %v355 = vmul.f32 %v342, %v354
        %v356 = vmul.f32 %v343, %v354
        %v357 = vmax.f32 %v355, 0.0
        %v358 = vmax.f32 %v356, 0.0
        %v359 = vxor.u32 %v357, 2147483648
        %v360 = vxor.u32 %v358, 2147483648
        %v361 = vmul.f32 %v359, 1.442695
        %v362 = vpow.pop %v361
        %v363 = vmul.f32 %v360, 1.442695
        %v364 = vpow.pop %v363
        %v365 = vadd.f32 %v362, 1.0
        %v366 = vadd.f32 %v364, 1.0
        %v367 = vrcp.pop %v365
        %v368 = vmul.f32 %v365, %v367
        %v369 = vsub.f32 1.0, %v368
        %v370 = vmul.f32 %v367, %v369
        %v371 = vadd.f32 %v367, %v370
        %vm372 = vweird.f32 %v365
        %vm373 = vweird.f32 %v367
        %vm374 = vmor %vm372, %vm373
        %v375 = vsel %vm374, %v367, %v371
        %v376 = vand.u32 2147483647, %v365
        %vm377 = vcmp.eq.f32.partialorder %v376, 8.507059e+37
        %v378 = vand.u32 %v365, 2147483648
        %v379 = vor.u32 1.1754944e-38, %v378
        %v380 = vsel %vm377, %v379, %v375
        %v381 = vmul.f32 1.0, %v380
        %v382 = vrcp.pop %v366
        %v383 = vmul.f32 %v366, %v382
        %v384 = vsub.f32 1.0, %v383
        %v385 = vmul.f32 %v382, %v384
        %v386 = vadd.f32 %v382, %v385
        %vm387 = vweird.f32 %v366
        %vm388 = vweird.f32 %v382
        %vm389 = vmor %vm387, %vm388
        %v390 = vsel %vm389, %v382, %v386
        %v391 = vand.u32 2147483647, %v366
        %vm392 = vcmp.eq.f32.partialorder %v391, 8.507059e+37
        %v393 = vand.u32 %v366, 2147483648
        %v394 = vor.u32 1.1754944e-38, %v393
        %v395 = vsel %vm392, %v394, %v390
        %v396 = vmul.f32 1.0, %v395
        %v399 = vrot.slane %v396, 4
        %v400 = vsel %vm248, %v381, %v399
        %v402 = vmul.f32 %v189, %v400
        %403 = vst.sshfl [vmem:[#allocation1] sm:$0xff pattern:$0x75316420] %v381
        %404 = vst.sshfl [vmem:[#allocation1 + $0x8] sm:$0xff pattern:$0x75316420] %v396
        %s405 = scalar_lea.vmem [#allocation1], 1
        %v406 = vld [vmem:[%s405] ss:$2 sm:$0xff]
        %v408 = vadd.f32 %v402, %v406
        %410 = vst [vmem:[#allocation1] ss:$2 sm:$0xff] %v408
        %v411 = vld.sshfl [vmem:[#allocation1] sm:$0xff pattern:$0x75316420]
        %v412 = vld.sshfl [vmem:[#allocation1 + $0x8] sm:$0xff pattern:$0x75316420]
        %v415 = vmul.f32 %v288, %v411
        %v416 = vmul.f32 %v289, %v412
        %v419 = vrot.slane %v416, 4
        %v420 = vsel %vm248, %v415, %v419
        %422 = vst [vmem:[%s188] sm:$0xff] %v420
        %s423 = sand.u32 %s96, 1
        %s424 = scalar_lea.sflag [#allocation4], %s423
        %s425 = sand.u32 %s96, 1
        %s426 = smul.addr %s425, 8
        %s427 = scalar_lea.vmem [#allocation5], %s426
        // Predicated region
        $region37: #{tpu_custom_call.1} parent=31 // pred_check
          %p428 = pneg %p106
        $region38: #{tpu_custom_call.1} parent=31 // pred_check_branch
          %430 = sbr.rel (%p428) target = $region40
        $region39: #{tpu_custom_call.1} parent=31 // pred_region
          %432 = vsyncadd %s424, 0
          %s433 = smul.addr %s20, 2
          %s434 = smul.addr %s433, 4
          %s435 = scalar_lea.hbm %s3, %s434
          %s437 = sshll.u32 %s427, 4
          %s438 = int_to_ptr.vmem [resolvable:$true] %s437
          %s439 = sshll.u32 %s435, 4
          %s440 = int_to_ptr.hbm [resolvable:$true] %s439
          %442 = dma.vmem_to_hbm [thread:$0]  %s438, 128, %s440, %s424
        $region40: #{tpu_custom_call.1} parent=31 // pred_fallthru
          _
      $region32: #{tpu_custom_call.1} parent=5 // pred_fallthru
        _
      %p443 = scmp.le.s32.totalorder 2, %s15
      // Predicated region
      $region41: #{tpu_custom_call.1} parent=5 // pred_check
        %p444 = pneg %p443
      $region42: #{tpu_custom_call.1} parent=5 // pred_check_branch
        %446 = sbr.rel (%p444) target = $region44
      $region43: #{tpu_custom_call.1} parent=5 // pred_region
        %s447 = ssub.s32 %s15, 2
        // Predicated region
        $region45: #{tpu_custom_call.1} parent=43 // pred_check
          %p448 = pneg %p112
        $region46: #{tpu_custom_call.1} parent=43 // pred_check_branch
          %450 = sbr.rel (%p448) target = $region48
        $region47: #{tpu_custom_call.1} parent=43 // pred_region
          %s451 = sand.u32 %s97, 1
          %s452 = scalar_lea.sflag [#allocation4], %s451
          %s453 = sand.u32 %s97, 1
          %s454 = smul.addr %s453, 8
          %s455 = scalar_lea.vmem [#allocation5], %s454
          %457 = dma.done %s452, 128
        $region48: #{tpu_custom_call.1} parent=43 // pred_fallthru
          _
      $region44: #{tpu_custom_call.1} parent=5 // pred_fallthru
        _
    $region6: #{tpu_custom_call.1} parent=1 // loop_footer
      %s19 = sadd.s32 1, %s15
    $region7: #{tpu_custom_call.1} parent=1 // loop_footer_branch
      %14 = sbr.rel target = $region3
    $region8: #{tpu_custom_call.1} parent=1 // loop_exit
      _
    %458 = vsyncpa [#allocation3], 1
    %s459 = scalar_lea.sflag [#allocation3], 1
    %460 = vsyncpa %s459, 1
    %461 = vsyncpa [#allocation4], 1
    %s462 = scalar_lea.sflag [#allocation4], 1
    %463 = vsyncpa %s462, 1

</llo_original>
